<compile_context>
chip_gen: v6e
topology: v6e:2x2x1
jax: 0.10.0
libtpu: 0.0.40
codegen_flags: <defaults>
</compile_context>

<pallas_src>
import functools

import jax
import jax.numpy as jnp
from jax.experimental import pallas as pl
from jax.experimental.pallas import tpu as pltpu

LEAKY_RATE = 0.1


# ----------------------------- kernel -----------------------------

def _conv1d_mm_kernel(x_ref, w_ref, b_ref, o_ref, *, negative_slope,
                      use_activation, use_leaky):
    # x_ref: (tm, K*C_in)   w_ref: (K*C_in, C_out)   b_ref: (1, C_out)
    x = x_ref[...]
    y = jnp.dot(x, w_ref[...], preferred_element_type=jnp.float32)
    y = y + b_ref[...]                     # bias (broadcast over rows)
    if use_activation:
        if use_leaky:
            y = jnp.where(y >= 0.0, y, negative_slope * y)   # LeakyReLU(0.1)
        else:
            y = jnp.maximum(y, 0.0)                          # ReLU
    o_ref[...] = y.astype(o_ref.dtype)
    # NOTE: bn=use_bn=False in the module default, so BatchNorm1d == Identity.


# ----------------------------- wrapper -----------------------------

def conv1d_forward(x, weight, bias, *, stride=1, padding=0,
                   use_activation=True, use_leaky=True, tile_m=128):
    """x: (B, N, C_in) f32; weight: (C_out, C_in, K) torch layout; bias: (C_out,)."""
    B, N, C_in = x.shape
    C_out, C_in_w, K = weight.shape
    assert C_in_w == C_in

    # --- im2col (layout only; exact no-op for the module's default K=1, s=1, p=0)
    if padding:
        x = jnp.pad(x, ((0, 0), (padding, padding), (0, 0)))
    Np = x.shape[1]
    L_out = (Np - K) // stride + 1
    if K == 1 and stride == 1:
        patches = x[:, :L_out]                                   # (B, L_out, C_in)
    else:
        taps = [x[:, k:k + stride * L_out:stride, :] for k in range(K)]
        patches = jnp.stack(taps, axis=2).reshape(B, L_out, K * C_in)

    # --- weight-only transforms, done once outside the kernel
    w_mat = jnp.transpose(weight, (2, 1, 0)).reshape(K * C_in, C_out)
    b_row = bias.reshape(1, C_out)

    # --- fold batch + sequence into the matmul M dimension
    M = B * L_out
    xm = patches.reshape(M, K * C_in)
    tm = max(8, (min(tile_m, max(8, M)) // 8) * 8)
    Mp = pl.cdiv(M, tm) * tm
    if Mp != M:
        xm = jnp.pad(xm, ((0, Mp - M), (0, 0)))
    grid = (Mp // tm,)

    kernel = functools.partial(_conv1d_mm_kernel,
                               negative_slope=LEAKY_RATE,
                               use_activation=use_activation,
                               use_leaky=use_leaky)

    out = pl.pallas_call(
        kernel,
        out_shape=jax.ShapeDtypeStruct((Mp, C_out), x.dtype),
        grid=grid,
        in_specs=[pl.BlockSpec((tm, K * C_in), lambda i: (i, 0)),
                  pl.BlockSpec((K * C_in, C_out), lambda i: (0, 0)),
                  pl.BlockSpec((1, C_out), lambda i: (0, 0))],
        out_specs=pl.BlockSpec((tm, C_out), lambda i: (i, 0)),
        compiler_params=pltpu.CompilerParams(dimension_semantics=("parallel",)),
    )(xm, w_mat, b_row)

    return out[:M].reshape(B, L_out, C_out)


# ----------------------------- pure-JAX reference -----------------------------

def _ref_forward(x, weight, bias, *, stride=1, padding=0,
                 use_activation=True, use_leaky=True):
    xc = jnp.transpose(x, (0, 2, 1))                             # (B, C_in, N)
    y = jax.lax.conv_general_dilated(
        xc, weight, window_strides=(stride,), padding=[(padding, padding)],
        dimension_numbers=("NCH", "OIH", "NCH"),
        precision=jax.lax.Precision.HIGHEST)
    y = y + bias[None, :, None]
    if use_activation:
        y = jnp.where(y >= 0.0, y, LEAKY_RATE * y) if use_leaky else jnp.maximum(y, 0.0)
    return jnp.transpose(y, (0, 2, 1))                           # (B, L_out, C_out)


# ----------------------------- main -----------------------------

if __name__ == "__main__":
    key = jax.random.PRNGKey(0)
    kx, kw1, kb1, kw3, kb3 = jax.random.split(key, 5)

    B, N, C_in, C_out = 2, 256, 64, 128
    x = jax.random.normal(kx, (B, N, C_in), dtype=jnp.float32)

    # default module config: kernel_size=1, stride=1, padding=0, LeakyReLU(0.1), no BN
    w1 = (0.05 * jax.random.normal(kw1, (C_out, C_in, 1))).astype(jnp.float32)
    b1 = (0.05 * jax.random.normal(kb1, (C_out,))).astype(jnp.float32)

    fwd = jax.jit(functools.partial(conv1d_forward, stride=1, padding=0))
    out = jax.block_until_ready(fwd(x, w1, b1))
    assert out.shape == (B, N, C_out)
    assert bool(jnp.all(jnp.isfinite(out)))
    err = float(jnp.max(jnp.abs(out - _ref_forward(x, w1, b1))))
    assert err < 1e-3, f"k=1 mismatch vs reference: max abs err = {err}"

    # also exercise the general Conv1d path (kernel_size=3, stride=2, padding=1)
    K, S, P = 3, 2, 1
    w3 = (0.05 * jax.random.normal(kw3, (C_out, C_in, K))).astype(jnp.float32)
    b3 = (0.05 * jax.random.normal(kb3, (C_out,))).astype(jnp.float32)
    fwd3 = jax.jit(functools.partial(conv1d_forward, stride=S, padding=P))
    out3 = jax.block_until_ready(fwd3(x, w3, b3))
    L_out3 = (N + 2 * P - K) // S + 1
    assert out3.shape == (B, L_out3, C_out)
    assert bool(jnp.all(jnp.isfinite(out3)))
    err3 = float(jnp.max(jnp.abs(out3 - _ref_forward(x, w3, b3, stride=S, padding=P))))
    assert err3 < 1e-3, f"k=3 mismatch vs reference: max abs err = {err3}"

    print("KERNEL_OK")
</pallas_src>

<mosaic_0001>
module attributes {stable_mosaic.version = 11 : i64} {
  func.func @_conv1d_mm_kernel(%arg0: i32, %arg1: memref<128x64xf32, #tpu.memory_space<vmem>>, %arg2: memref<64x128xf32, #tpu.memory_space<vmem>>, %arg3: memref<1x128xf32, #tpu.memory_space<vmem>>, %arg4: memref<128x128xf32, #tpu.memory_space<vmem>>) attributes {dimension_semantics = [#tpu.dimension_semantics<parallel>], iteration_bounds = array<i64: 4>, scalar_prefetch = 0 : i64, scratch_operands = 0 : i64, tpu.core_type = #tpu.core_type<tc>, window_params = [{transform_indices = @transform_0, window_bounds = array<i64: 128, 64>}, {pipeline_mode = #tpu.pipeline_mode<synchronous>, transform_indices = @transform_1, window_bounds = array<i64: 64, 128>}, {pipeline_mode = #tpu.pipeline_mode<synchronous>, transform_indices = @transform_2, window_bounds = array<i64: 1, 128>}, {transform_indices = @transform_3, window_bounds = array<i64: 128, 128>}]} {
    %c0 = arith.constant 0 : index
    %c0_0 = arith.constant 0 : index
    %0 = vector.load %arg1[%c0, %c0_0] : memref<128x64xf32, #tpu.memory_space<vmem>>, vector<128x64xf32>
    %c0_1 = arith.constant 0 : index
    %c0_2 = arith.constant 0 : index
    %1 = vector.load %arg2[%c0_1, %c0_2] : memref<64x128xf32, #tpu.memory_space<vmem>>, vector<64x128xf32>
    %cst = arith.constant dense<0.000000e+00> : vector<128x128xf32>
    %2 = tpu.matmul %0, %1, %cst {dimension_numbers = #tpu.dot_dimension_numbers<[1], [0], [0], [1], [0, 0, 1, 1], [], []>} : vector<128x64xf32>, vector<64x128xf32>, vector<128x128xf32> -> vector<128x128xf32>
    %c0_3 = arith.constant 0 : index
    %c0_4 = arith.constant 0 : index
    %3 = vector.load %arg3[%c0_3, %c0_4] : memref<1x128xf32, #tpu.memory_space<vmem>>, vector<1x128xf32>
    %4 = vector.broadcast %3 : vector<1x128xf32> to vector<128x128xf32>
    %5 = arith.addf %2, %4 : vector<128x128xf32>
    %cst_5 = arith.constant 0.000000e+00 : f32
    %6 = vector.broadcast %cst_5 : f32 to vector<128x128xf32>
    %7 = arith.cmpf oge, %5, %6 : vector<128x128xf32>
    %cst_6 = arith.constant 1.000000e-01 : f32
    %8 = vector.broadcast %cst_6 : f32 to vector<128x128xf32>
    %9 = arith.mulf %8, %5 : vector<128x128xf32>
    %10 = arith.select %7, %5, %9 : vector<128x128xi1>, vector<128x128xf32>
    %c0_7 = arith.constant 0 : index
    %c0_8 = arith.constant 0 : index
    %11 = vector.load %arg4[%c0_7, %c0_8] : memref<128x128xf32, #tpu.memory_space<vmem>>, vector<128x128xf32>
    tpu.vector_store %arg4[%c0_7, %c0_8], %10 {strides = array<i32>} : memref<128x128xf32, #tpu.memory_space<vmem>>, vector<128x128xf32>,
    return
  }
  func.func @transform_0(%arg0: i32) -> (i32, i32) {
    %c0_i32 = arith.constant 0 : i32
    %c0_i32_0 = arith.constant 0 : i32
    return %arg0, %c0_i32 : i32, i32
  }
  func.func @transform_1(%arg0: i32) -> (i32, i32) {
    %c0_i32 = arith.constant 0 : i32
    %c0_i32_0 = arith.constant 0 : i32
    %c0_i32_1 = arith.constant 0 : i32
    return %c0_i32, %c0_i32_0 : i32, i32
  }
  func.func @transform_2(%arg0: i32) -> (i32, i32) {
    %c0_i32 = arith.constant 0 : i32
    %c0_i32_0 = arith.constant 0 : i32
    %c0_i32_1 = arith.constant 0 : i32
    return %c0_i32, %c0_i32_0 : i32, i32
  }
  func.func @transform_3(%arg0: i32) -> (i32, i32) {
    %c0_i32 = arith.constant 0 : i32
    %c0_i32_0 = arith.constant 0 : i32
    return %arg0, %c0_i32 : i32, i32
  }
}

</mosaic_0001>

<llo_original>
// kernel: conv1d_forward.1
$region0: #{conv1d_forward.1}
  #allocation0 [shape = 'u32[]', space=smem, size = 0x4, offset = 0x4, fixed_abs, tag = 'smem constant byte address 0x4 - core index']
  #allocation1 [shape = 'u32[144,128]{1,0:T(1,128)}', space=vmem, size = 0x12000, scoped, tag = 'internal scratch']
  %s0 = inlined_call_operand.vmem [shape: f32[512,64], index: 0, kind: input, shape index: {}]
  %s1 = inlined_call_operand.vmem [shape: f32[64,128], index: 1, kind: input, shape index: {}]
  %s2 = inlined_call_operand.vmem [shape: f32[1,128], index: 2, kind: input, shape index: {}]
  %s3 = inlined_call_operand.hbm [shape: f32[512,128], index: 3, kind: output, shape index: {}]
  %s4 = sld [smem:[#allocation0]]
  $region45: #{conv1d_forward.1} parent=0
    _
  %s6 = ssub.s32 1, %s4
  %s7 = scalar_select 0, %s6, %s4
  $region1: #{conv1d_forward.1} parent=0
    #allocation2 [shape = 'u8[131072]{0}', space=vmem, size = 0x20000, scoped, tag = 'output window, operand 0']
    #allocation3 [shape = 's32[2]{0}', space=sflag, size = 0x8, scoped, tag = 'scoped memory for conv1d_forward.1']
    %8 = vsyncpa [#allocation3], 0
    %s9 = scalar_lea.sflag [#allocation3], 1
    %10 = vsyncpa %s9, 0
    loop: start=0, step=1, limit=6
    $region2: #{conv1d_forward.1} parent=1 // loop_pre_header
      _
    $region3: #{conv1d_forward.1} parent=1 // loop_header
      %s12 = sphi 0, %s16
      %p13 = scmp.ge.s32.totalorder %s12, 6
      %s22 = sphi 0, %s24
      %s25 = sphi 0, %s22
      %s26 = sphi 0, %s25
      %s42 = sphi 0, %s26
      %s46 = sphi 0, %s46
      %s48 = sphi 0, %s46
      %s49 = sphi 0, %s48
      %s63 = sphi 0, %s49
      %s67 = sphi 0, %s67
      %s69 = sphi 0, %s67
      %s70 = sphi 0, %s69
      %s84 = sphi 0, %s70
      %s90 = sphi 0, %s92
      %s93 = sphi 0, %s90
      %s94 = sphi 0, %s93
      %s110 = sphi 0, %s94
    $region4: #{conv1d_forward.1} parent=1 // loop_header_branch
      %15 = sbr.rel (%p13) target = $region8
    $region5: #{conv1d_forward.1} parent=1 // loop_body
      %s17 = ssub.s32 %s12, 1
      %s18 = ssub.s32 %s12, 2
      %s19 = sadd.s32 %s12, 1
      %s20 = ssub.s32 %s12, %s19
      %p21 = scmp.eq.s32.totalorder %s20, 0
      %s23 = sadd.s32 %s22, 1
      %s24 = scalar_select %p21, %s22, %s23
      %p27 = pneg %p21
      %p28 = scmp.eq.s32.totalorder %s12, 3
      %p29 = por %p27, %p28
      %p30 = scmp.ne.s32.totalorder %s22, %s25
      %p31 = scmp.eq.s32.totalorder %s12, 0
      %p32 = por %p30, %p31
      %p33 = scmp.ne.s32.totalorder %s22, %s25
      %p34 = scmp.eq.s32.totalorder %s17, 3
      %p35 = por %p33, %p34
      %p36 = scmp.ne.s32.totalorder %s25, %s26
      %p37 = scmp.eq.s32.totalorder %s17, 0
      %p38 = por %p36, %p37
      %p39 = scmp.ne.s32.totalorder %s25, %s26
      %p40 = scmp.eq.s32.totalorder %s18, 3
      %p41 = por %p39, %p40
      %p43 = scmp.ne.s32.totalorder %s26, %s42
      %p44 = scmp.eq.s32.totalorder %s18, 0
      %p45 = por %p43, %p44
      %s47 = sadd.s32 %s46, 1
      %p50 = scmp.eq.s32.totalorder %s12, 3
      %p51 = scmp.ne.s32.totalorder %s46, %s48
      %p52 = scmp.eq.s32.totalorder %s12, 0
      %p53 = por %p51, %p52
      %p54 = scmp.ne.s32.totalorder %s46, %s48
      %p55 = scmp.eq.s32.totalorder %s17, 3
      %p56 = por %p54, %p55
      %p57 = scmp.ne.s32.totalorder %s48, %s49
      %p58 = scmp.eq.s32.totalorder %s17, 0
      %p59 = por %p57, %p58
      %p60 = scmp.ne.s32.totalorder %s48, %s49
      %p61 = scmp.eq.s32.totalorder %s18, 3
      %p62 = por %p60, %p61
      %p64 = scmp.ne.s32.totalorder %s49, %s63
      %p65 = scmp.eq.s32.totalorder %s18, 0
      %p66 = por %p64, %p65
      %s68 = sadd.s32 %s67, 1
      %p71 = scmp.eq.s32.totalorder %s12, 3
      %p72 = scmp.ne.s32.totalorder %s67, %s69
      %p73 = scmp.eq.s32.totalorder %s12, 0
      %p74 = por %p72, %p73
      %p75 = scmp.ne.s32.totalorder %s67, %s69
      %p76 = scmp.eq.s32.totalorder %s17, 3
      %p77 = por %p75, %p76
      %p78 = scmp.ne.s32.totalorder %s69, %s70
      %p79 = scmp.eq.s32.totalorder %s17, 0
      %p80 = por %p78, %p79
      %p81 = scmp.ne.s32.totalorder %s69, %s70
      %p82 = scmp.eq.s32.totalorder %s18, 3
      %p83 = por %p81, %p82
      %p85 = scmp.ne.s32.totalorder %s70, %s84
      %p86 = scmp.eq.s32.totalorder %s18, 0
      %p87 = por %p85, %p86
      %s88 = ssub.s32 %s12, %s19
      %p89 = scmp.eq.s32.totalorder %s88, 0
      %s91 = sadd.s32 %s90, 1
      %s92 = scalar_select %p89, %s90, %s91
      %p95 = pneg %p89
      %p96 = scmp.eq.s32.totalorder %s12, 3
      %p97 = por %p95, %p96
      %p98 = scmp.ne.s32.totalorder %s90, %s93
      %p99 = scmp.eq.s32.totalorder %s12, 0
      %p100 = por %p98, %p99
      %p101 = scmp.ne.s32.totalorder %s90, %s93
      %p102 = scmp.eq.s32.totalorder %s17, 3
      %p103 = por %p101, %p102
      %p104 = scmp.ne.s32.totalorder %s93, %s94
      %p105 = scmp.eq.s32.totalorder %s17, 0
      %p106 = por %p104, %p105
      %p107 = scmp.ne.s32.totalorder %s93, %s94
      %p108 = scmp.eq.s32.totalorder %s18, 3
      %p109 = por %p107, %p108
      %p111 = scmp.ne.s32.totalorder %s94, %s110
      %p112 = scmp.eq.s32.totalorder %s18, 0
      %p113 = por %p111, %p112
      %p114 = scmp.le.s32.totalorder 1, %s12
      %p115 = scmp.lt.s32.totalorder %s12, 5
      %p116 = pnand %p114, %p115
      %p117 = pneg %p116
      // Predicated region
      $region9: #{conv1d_forward.1} parent=5 // pred_check
        _
      $region10: #{conv1d_forward.1} parent=5 // pred_check_branch
        %119 = sbr.rel (%p116) target = $region12
      $region11: #{conv1d_forward.1} parent=5 // pred_region
        %s120 = ssub.s32 %s12, 1
        // Predicated region
        $region13: #{conv1d_forward.1} parent=11 // pred_check
          %p121 = pneg %p59
        $region14: #{conv1d_forward.1} parent=11 // pred_check_branch
          %123 = sbr.rel (%p121) target = $region16
        $region15: #{conv1d_forward.1} parent=11 // pred_region
          _
        $region16: #{conv1d_forward.1} parent=11 // pred_fallthru
          _
        // Predicated region
        $region17: #{conv1d_forward.1} parent=11 // pred_check
          %p124 = pneg %p80
        $region18: #{conv1d_forward.1} parent=11 // pred_check_branch
          %126 = sbr.rel (%p124) target = $region20
        $region19: #{conv1d_forward.1} parent=11 // pred_region
          _
        $region20: #{conv1d_forward.1} parent=11 // pred_fallthru
          _
      $region12: #{conv1d_forward.1} parent=5 // pred_fallthru
        _
      %p127 = scmp.lt.s32.totalorder %s12, 4
      // Predicated region
      $region21: #{conv1d_forward.1} parent=5 // pred_check
        %p128 = pneg %p127
      $region22: #{conv1d_forward.1} parent=5 // pred_check_branch
        %130 = sbr.rel (%p128) target = $region24
      $region23: #{conv1d_forward.1} parent=5 // pred_region
        // Predicated region
        $region25: #{conv1d_forward.1} parent=23 // pred_check
          %p131 = pneg %p32
        $region26: #{conv1d_forward.1} parent=23 // pred_check_branch
          %133 = sbr.rel (%p131) target = $region28
        $region27: #{conv1d_forward.1} parent=23 // pred_region
          %s134 = smul.u32 16, %s12
          %p135 = scmp.lt.s32.totalorder %s134, 63
          %s136 = scalar_select %p135, %s134, 63
          %s137 = smul.addr %s136, 8
          %s138 = scalar_lea.vmem %s0, %s137
          %s139 = smul.u32 16, %s12
        $region28: #{conv1d_forward.1} parent=23 // pred_fallthru
          _
      $region24: #{conv1d_forward.1} parent=5 // pred_fallthru
        _
      %p140 = scmp.le.s32.totalorder 1, %s12
      %p141 = scmp.lt.s32.totalorder %s12, 5
      %p142 = pnand %p140, %p141
      %p143 = pneg %p142
      // Predicated region
      $region29: #{conv1d_forward.1} parent=5 // pred_check
        _
      $region30: #{conv1d_forward.1} parent=5 // pred_check_branch
        %145 = sbr.rel (%p142) target = $region32
      $region31: #{conv1d_forward.1} parent=5 // pred_region
        %s146 = ssub.s32 %s12, 1
        %s147 = smul.u32 16, %s17
        %p148 = scmp.lt.s32.totalorder %s147, 63
        %s149 = scalar_select %p148, %s147, 63
        %s150 = smul.addr %s149, 8
        %s151 = scalar_lea.vmem %s0, %s150
        %p152 = pneg %p38
        %p153 = pneg %p35
        %p154 = pneg %p59
        %p155 = pneg %p56
        %p156 = pneg %p80
        %p157 = pneg %p77
        %p158 = pneg %p106
        %p159 = pneg %p103
        %s160 = sand.u32 %s93, 1
        %s161 = scalar_lea.sflag [#allocation3], %s160
        %s162 = sand.u32 %s93, 1
        %s163 = smul.addr %s162, 128
        %s164 = scalar_lea.vmem [#allocation2], %s163
        %s165 = smul.u32 16, %s17
        %p166 = scmp.lt.s32.totalorder %s165, 63
        %s167 = scalar_select %p166, %s165, 63
        %s168 = smul.addr %s167, 8
        %s169 = scalar_lea.vmem %s0, %s168
        %s170 = smul.u32 16, %s17
        %s171 = smul.u32 16, %s17
        %v172 = vld [vmem:[%s169] sm:$0xff]
        %v173 = vld [vmem:[%s169 + $0x8] sm:$0xff]
        %v174 = vld [vmem:[%s169 + $0x10] sm:$0xff]
        %v175 = vld [vmem:[%s169 + $0x18] sm:$0xff]
        %v176 = vld [vmem:[%s169 + $0x20] sm:$0xff]
        %v177 = vld [vmem:[%s169 + $0x28] sm:$0xff]
        %v178 = vld [vmem:[%s169 + $0x30] sm:$0xff]
        %v179 = vld [vmem:[%s169 + $0x38] sm:$0xff]
        %v180 = vld [vmem:[%s169 + $0x40] sm:$0xff]
        %v181 = vld [vmem:[%s169 + $0x48] sm:$0xff]
        %v182 = vld [vmem:[%s169 + $0x50] sm:$0xff]
        %v183 = vld [vmem:[%s169 + $0x58] sm:$0xff]
        %v184 = vld [vmem:[%s169 + $0x60] sm:$0xff]
        %v185 = vld [vmem:[%s169 + $0x68] sm:$0xff]
        %v186 = vld [vmem:[%s169 + $0x70] sm:$0xff]
        %v187 = vld [vmem:[%s169 + $0x78] sm:$0xff]
        %v188 = vld [vmem:[%s1] sm:$0xff]
        %v189 = vld [vmem:[%s1 + $0x8] sm:$0xff]
        %v190 = vld [vmem:[%s1 + $0x10] sm:$0xff]
        %v191 = vld [vmem:[%s1 + $0x18] sm:$0xff]
        %v192 = vld [vmem:[%s1 + $0x20] sm:$0xff]
        %v193 = vld [vmem:[%s1 + $0x28] sm:$0xff]
        %v194 = vld [vmem:[%s1 + $0x30] sm:$0xff]
        %v195 = vld [vmem:[%s1 + $0x38] sm:$0xff]
        %v196 = vld [vmem:[%s2] sm:$0x1]
        %v198 = vlaneseq
        %v199 = vshrl.u32 %v198, 7
        %v200 = vsub.s32 0, %v199
        %v201 = vrot.slane %v196, %v200
        %vm203 = vcmask 523264
        %v205 = vsel %vm203, %v172, 0
        %v208 = vsel %vm203, %v173, 0
        %v211 = vsel %vm203, %v174, 0
        %v214 = vsel %vm203, %v175, 0
        %v217 = vsel %vm203, %v176, 0
        %v220 = vsel %vm203, %v177, 0
        %v223 = vsel %vm203, %v178, 0
        %v226 = vsel %vm203, %v179, 0
        %v229 = vsel %vm203, %v180, 0
        %v232 = vsel %vm203, %v181, 0
        %v235 = vsel %vm203, %v182, 0
        %v238 = vsel %vm203, %v183, 0
        %v241 = vsel %vm203, %v184, 0
        %v244 = vsel %vm203, %v185, 0
        %v247 = vsel %vm203, %v186, 0
        %v250 = vsel %vm203, %v187, 0
        %252 = vmatprep.subr.mxu0 0.0
        %253 = vmatpush1.msra.mxu0 0.0
        %254 = vmatprep.subr.mxu0 0.0
        %255 = vmatpush1.msra.mxu0 0.0
        %256 = vmatprep.subr.mxu0 0.0
        %257 = vmatpush1.msra.mxu0 0.0
        %258 = vmatprep.subr.mxu0 0.0
        %259 = vmatpush1.msra.mxu0 0.0
        %260 = vmatprep.subr.mxu0 0.0
        %261 = vmatpush1.msra.mxu0 0.0
        %262 = vmatprep.subr.mxu0 0.0
        %263 = vmatpush1.msra.mxu0 0.0
        %264 = vmatprep.subr.mxu0 0.0
        %265 = vmatpush1.msra.mxu0 0.0
        %266 = vmatprep.subr.mxu0 0.0
        %267 = vmatpush1.msra.mxu0 0.0
        %268 = vmatprep.subr.mxu0 0.0
        %269 = vmatpush1.msra.mxu0 %v195
        %270 = vmatprep.subr.mxu0 0.0
        %271 = vmatpush1.msra.mxu0 %v194
        %272 = vmatprep.subr.mxu0 0.0
        %273 = vmatpush1.msra.mxu0 %v193
        %274 = vmatprep.subr.mxu0 0.0
        %275 = vmatpush1.msra.mxu0 %v192
        %276 = vmatprep.subr.mxu0 0.0
        %277 = vmatpush1.msra.mxu0 %v191
        %278 = vmatprep.subr.mxu0 0.0
        %279 = vmatpush1.msra.mxu0 %v190
        %280 = vmatprep.subr.mxu0 0.0
        %281 = vmatpush1.msra.mxu0 %v189
        %282 = vmatprep.subr.mxu0 0.0
        %283 = vmatpush1.msra.mxu0 %v188
        %284 = vmatprep.subr.mxu0 0.0
        %285 = vmatpush2.msra.mxu0 0.0
        %286 = vmatprep.subr.mxu0 0.0
        %287 = vmatpush2.msra.mxu0 0.0
        %288 = vmatprep.subr.mxu0 0.0
        %289 = vmatpush2.msra.mxu0 0.0
        %290 = vmatprep.subr.mxu0 0.0
        %291 = vmatpush2.msra.mxu0 0.0
        %292 = vmatprep.subr.mxu0 0.0
        %293 = vmatpush2.msra.mxu0 0.0
        %294 = vmatprep.subr.mxu0 0.0
        %295 = vmatpush2.msra.mxu0 0.0
        %296 = vmatprep.subr.mxu0 0.0
        %297 = vmatpush2.msra.mxu0 0.0
        %298 = vmatprep.subr.mxu0 0.0
        %299 = vmatpush2.msra.mxu0 0.0
        %300 = vmatprep.subr.mxu0 0.0
        %301 = vmatpush2.msra.mxu0 0.0
        %302 = vmatprep.subr.mxu0 0.0
        %303 = vmatpush2.msra.mxu0 0.0
        %304 = vmatprep.subr.mxu0 0.0
        %305 = vmatpush2.msra.mxu0 0.0
        %306 = vmatprep.subr.mxu0 0.0
        %307 = vmatpush2.msra.mxu0 0.0
        %308 = vmatprep.subr.mxu0 0.0
        %309 = vmatpush2.msra.mxu0 0.0
        %310 = vmatprep.subr.mxu0 0.0
        %311 = vmatpush2.msra.mxu0 0.0
        %312 = vmatprep.subr.mxu0 0.0
        %313 = vmatpush2.msra.mxu0 0.0
        %314 = vmatprep.subr.mxu0 0.0
        %315 = vmatpush2.msra.mxu0 0.0
        %316 = vmatprep.mubr.f32.mxu0 0.0
        %317 = vmatmul.mubr.f32.gmra.mxu0 %v205
        %v318 = vpop.f32.mrf.mxu0
        %v319 = vadd.f32 %v201, %v318
        %v320 = vpop.f32.mrf.mxu0
        %321 = vmatprep.mubr.f32.mxu0 0.0
        %322 = vmatmul.mubr.f32.gmra.mxu0 %v208
        %v323 = vpop.f32.mrf.mxu0
        %v324 = vadd.f32 %v201, %v323
        %v325 = vpop.f32.mrf.mxu0
        %326 = vmatprep.mubr.f32.mxu0 0.0
        %327 = vmatmul.mubr.f32.gmra.mxu0 %v211
        %v328 = vpop.f32.mrf.mxu0
        %v329 = vadd.f32 %v201, %v328
        %v330 = vpop.f32.mrf.mxu0
        %331 = vmatprep.mubr.f32.mxu0 0.0
        %332 = vmatmul.mubr.f32.gmra.mxu0 %v214
        %v333 = vpop.f32.mrf.mxu0
        %v334 = vadd.f32 %v201, %v333
        %v335 = vpop.f32.mrf.mxu0
        %336 = vmatprep.mubr.f32.mxu0 0.0
        %337 = vmatmul.mubr.f32.gmra.mxu0 %v217
        %v338 = vpop.f32.mrf.mxu0
        %v339 = vadd.f32 %v201, %v338
        %v340 = vpop.f32.mrf.mxu0
        %341 = vmatprep.mubr.f32.mxu0 0.0
        %342 = vmatmul.mubr.f32.gmra.mxu0 %v220
        %v343 = vpop.f32.mrf.mxu0
        %v344 = vadd.f32 %v201, %v343
        %v345 = vpop.f32.mrf.mxu0
        %346 = vmatprep.mubr.f32.mxu0 0.0
        %347 = vmatmul.mubr.f32.gmra.mxu0 %v223
        %v348 = vpop.f32.mrf.mxu0
        %v349 = vadd.f32 %v201, %v348
        %v350 = vpop.f32.mrf.mxu0
        %351 = vmatprep.mubr.f32.mxu0 0.0
        %352 = vmatmul.mubr.f32.gmra.mxu0 %v226
        %v353 = vpop.f32.mrf.mxu0
        %v354 = vadd.f32 %v201, %v353
        %v355 = vpop.f32.mrf.mxu0
        %356 = vmatprep.mubr.f32.mxu0 0.0
        %357 = vmatmul.mubr.f32.gmra.mxu0 %v229
        %v358 = vpop.f32.mrf.mxu0
        %v359 = vadd.f32 %v201, %v358
        %v360 = vpop.f32.mrf.mxu0
        %361 = vmatprep.mubr.f32.mxu0 0.0
        %362 = vmatmul.mubr.f32.gmra.mxu0 %v232
        %v363 = vpop.f32.mrf.mxu0
        %v364 = vadd.f32 %v201, %v363
        %v365 = vpop.f32.mrf.mxu0
        %366 = vmatprep.mubr.f32.mxu0 0.0
        %367 = vmatmul.mubr.f32.gmra.mxu0 %v235
        %v368 = vpop.f32.mrf.mxu0
        %v369 = vadd.f32 %v201, %v368
        %v370 = vpop.f32.mrf.mxu0
        %371 = vmatprep.mubr.f32.mxu0 0.0
        %372 = vmatmul.mubr.f32.gmra.mxu0 %v238
        %v373 = vpop.f32.mrf.mxu0
        %v374 = vadd.f32 %v201, %v373
        %v375 = vpop.f32.mrf.mxu0
        %376 = vmatprep.mubr.f32.mxu0 0.0
        %377 = vmatmul.mubr.f32.gmra.mxu0 %v241
        %v378 = vpop.f32.mrf.mxu0
        %v379 = vadd.f32 %v201, %v378
        %v380 = vpop.f32.mrf.mxu0
        %381 = vmatprep.mubr.f32.mxu0 0.0
        %382 = vmatmul.mubr.f32.gmra.mxu0 %v244
        %v383 = vpop.f32.mrf.mxu0
        %v384 = vadd.f32 %v201, %v383
        %v385 = vpop.f32.mrf.mxu0
        %386 = vmatprep.mubr.f32.mxu0 0.0
        %387 = vmatmul.mubr.f32.gmra.mxu0 %v247
        %v388 = vpop.f32.mrf.mxu0
        %v389 = vadd.f32 %v201, %v388
        %v390 = vpop.f32.mrf.mxu0
        %391 = vmatprep.mubr.f32.mxu0 0.0
        %392 = vmatmul.mubr.f32.gmra.mxu0 %v250
        %v393 = vpop.f32.mrf.mxu0
        %v394 = vadd.f32 %v201, %v393
        %v395 = vpop.f32.mrf.mxu0
        %396 = vdwg.mxu0
        %vm397 = vcmp.ge.f32.partialorder %v319, 0.0
        %vm398 = vcmp.ge.f32.partialorder %v324, 0.0
        %vm399 = vcmp.ge.f32.partialorder %v329, 0.0
        %vm400 = vcmp.ge.f32.partialorder %v334, 0.0
        %vm401 = vcmp.ge.f32.partialorder %v339, 0.0
        %vm402 = vcmp.ge.f32.partialorder %v344, 0.0
        %vm403 = vcmp.ge.f32.partialorder %v349, 0.0
        %vm404 = vcmp.ge.f32.partialorder %v354, 0.0
        %vm405 = vcmp.ge.f32.partialorder %v359, 0.0
        %vm406 = vcmp.ge.f32.partialorder %v364, 0.0
        %vm407 = vcmp.ge.f32.partialorder %v369, 0.0
        %vm408 = vcmp.ge.f32.partialorder %v374, 0.0
        %vm409 = vcmp.ge.f32.partialorder %v379, 0.0
        %vm410 = vcmp.ge.f32.partialorder %v384, 0.0
        %vm411 = vcmp.ge.f32.partialorder %v389, 0.0
        %vm412 = vcmp.ge.f32.partialorder %v394, 0.0
        %v413 = vmul.f32 %v319, 0.1
        %v414 = vmul.f32 %v324, 0.1
        %v415 = vmul.f32 %v329, 0.1
        %v416 = vmul.f32 %v334, 0.1
        %v417 = vmul.f32 %v339, 0.1
        %v418 = vmul.f32 %v344, 0.1
        %v419 = vmul.f32 %v349, 0.1
        %v420 = vmul.f32 %v354, 0.1
        %v421 = vmul.f32 %v359, 0.1
        %v422 = vmul.f32 %v364, 0.1
        %v423 = vmul.f32 %v369, 0.1
        %v424 = vmul.f32 %v374, 0.1
        %v425 = vmul.f32 %v379, 0.1
        %v426 = vmul.f32 %v384, 0.1
        %v427 = vmul.f32 %v389, 0.1
        %v428 = vmul.f32 %v394, 0.1
        %v429 = vsel %vm397, %v319, %v413
        %v430 = vsel %vm398, %v324, %v414
        %v431 = vsel %vm399, %v329, %v415
        %v432 = vsel %vm400, %v334, %v416
        %v433 = vsel %vm401, %v339, %v417
        %v434 = vsel %vm402, %v344, %v418
        %v435 = vsel %vm403, %v349, %v419
        %v436 = vsel %vm404, %v354, %v420
        %v437 = vsel %vm405, %v359, %v421
        %v438 = vsel %vm406, %v364, %v422
        %v439 = vsel %vm407, %v369, %v423
        %v440 = vsel %vm408, %v374, %v424
        %v441 = vsel %vm409, %v379, %v425
        %v442 = vsel %vm410, %v384, %v426
        %v443 = vsel %vm411, %v389, %v427
        %v444 = vsel %vm412, %v394, %v428
        %445 = vst [vmem:[%s164] sm:$0xff] %v429
        %446 = vst [vmem:[%s164 + $0x8] sm:$0xff] %v430
        %447 = vst [vmem:[%s164 + $0x10] sm:$0xff] %v431
        %448 = vst [vmem:[%s164 + $0x18] sm:$0xff] %v432
        %449 = vst [vmem:[%s164 + $0x20] sm:$0xff] %v433
        %450 = vst [vmem:[%s164 + $0x28] sm:$0xff] %v434
        %451 = vst [vmem:[%s164 + $0x30] sm:$0xff] %v435
        %452 = vst [vmem:[%s164 + $0x38] sm:$0xff] %v436
        %453 = vst [vmem:[%s164 + $0x40] sm:$0xff] %v437
        %454 = vst [vmem:[%s164 + $0x48] sm:$0xff] %v438
        %455 = vst [vmem:[%s164 + $0x50] sm:$0xff] %v439
        %456 = vst [vmem:[%s164 + $0x58] sm:$0xff] %v440
        %457 = vst [vmem:[%s164 + $0x60] sm:$0xff] %v441
        %458 = vst [vmem:[%s164 + $0x68] sm:$0xff] %v442
        %459 = vst [vmem:[%s164 + $0x70] sm:$0xff] %v443
        %460 = vst [vmem:[%s164 + $0x78] sm:$0xff] %v444
        %s461 = sand.u32 %s93, 1
        %s462 = scalar_lea.sflag [#allocation3], %s461
        %s463 = sand.u32 %s93, 1
        %s464 = smul.addr %s463, 128
        %s465 = scalar_lea.vmem [#allocation2], %s464
        // Predicated region
        $region33: #{conv1d_forward.1} parent=31 // pred_check
          %p466 = pneg %p103
        $region34: #{conv1d_forward.1} parent=31 // pred_check_branch
          %468 = sbr.rel (%p466) target = $region36
        $region35: #{conv1d_forward.1} parent=31 // pred_region
          %s469 = smul.u32 16, %s17
          %s471 = ssub.s32 2048, 2048
          %472 = vsyncadd %s462, %s471
          %s473 = smul.addr %s469, 128
          %s474 = scalar_lea.hbm %s3, %s473
          %s475 = sshll.u32 %s465, 4
          %s476 = int_to_ptr.vmem [resolvable:$true] %s475
          %481 = dma.vmem_to_hbm [thread:$0]  %s476, 2048, %s474, %s462, 128, 128, 8
        $region36: #{conv1d_forward.1} parent=31 // pred_fallthru
          _
      $region32: #{conv1d_forward.1} parent=5 // pred_fallthru
        _
      %p482 = scmp.le.s32.totalorder 2, %s12
      // Predicated region
      $region37: #{conv1d_forward.1} parent=5 // pred_check
        %p483 = pneg %p482
      $region38: #{conv1d_forward.1} parent=5 // pred_check_branch
        %485 = sbr.rel (%p483) target = $region40
      $region39: #{conv1d_forward.1} parent=5 // pred_region
        %s486 = ssub.s32 %s12, 2
        // Predicated region
        $region41: #{conv1d_forward.1} parent=39 // pred_check
          %p487 = pneg %p109
        $region42: #{conv1d_forward.1} parent=39 // pred_check_branch
          %489 = sbr.rel (%p487) target = $region44
        $region43: #{conv1d_forward.1} parent=39 // pred_region
          %s490 = sand.u32 %s94, 1
          %s491 = scalar_lea.sflag [#allocation3], %s490
          %s492 = sand.u32 %s94, 1
          %s493 = smul.addr %s492, 128
          %s494 = scalar_lea.vmem [#allocation2], %s493
          %495 = dma.done %s491, 2048
        $region44: #{conv1d_forward.1} parent=39 // pred_fallthru
          _
      $region40: #{conv1d_forward.1} parent=5 // pred_fallthru
        _
    $region6: #{conv1d_forward.1} parent=1 // loop_footer
      %s16 = sadd.s32 1, %s12
    $region7: #{conv1d_forward.1} parent=1 // loop_footer_branch
      %11 = sbr.rel target = $region3
    $region8: #{conv1d_forward.1} parent=1 // loop_exit
      _
    %496 = vsyncpa [#allocation3], 1
    %s497 = scalar_lea.sflag [#allocation3], 1
    %498 = vsyncpa %s497, 1

</llo_original>
